<compile_context>
chip_gen: v5e
topology: v5e:2x2
jax: 0.10.0
libtpu: 0.0.40
codegen_flags: <defaults>
</compile_context>

<pallas_src>
import functools

import numpy as np
import jax
import jax.numpy as jnp
from jax.experimental import pallas as pl
from jax.experimental.pallas import tpu as pltpu


# ----------------------------------------------------------------------------
# Kernel: full MultiHeadAttention forward, whole batch in a single grid step.
# All operands are full-array VMEM blocks.
# ----------------------------------------------------------------------------
def mha_kernel(x_ref, km_ref, wqkv_ref, bqkv_ref, wfc_ref, bfc_ref,
               gamma_ref, beta_ref, out_ref, attn_ref, *,
               n_head, d_k, d_v, batch, seq):
    H, dk, dv, B, S = n_head, d_k, d_v, batch, seq
    D = gamma_ref.shape[-1]
    nqk = H * dk
    nv = H * dv
    bf16 = jnp.bfloat16

    x = x_ref[...]                                     # (B*S, D) f32
    residual = x

    # ---- fused Q|K|V projection: one MXU matmul (bf16 in, f32 accumulate) ----
    qkv = jnp.dot(x.astype(bf16), wqkv_ref[...],
                  preferred_element_type=jnp.float32) + bqkv_ref[...]
    q = qkv[:, :nqk] * (1.0 / np.sqrt(dk))             # temperature folded into q once
    k = qkv[:, nqk:2 * nqk]
    v = qkv[:, 2 * nqk:2 * nqk + nv]

    # ---- head-major batching: (B*S, H*d) -> (H*B, S, d); the Python loop only
    #      does static lane slicing / concatenation, no matmuls or accumulation.
    q3 = q.reshape(B, S, nqk)
    k3 = k.reshape(B, S, nqk)
    v3 = v.reshape(B, S, nv)
    qh = jnp.concatenate([q3[:, :, h * dk:(h + 1) * dk] for h in range(H)], axis=0)
    kh = jnp.concatenate([k3[:, :, h * dk:(h + 1) * dk] for h in range(H)], axis=0)
    vh = jnp.concatenate([v3[:, :, h * dv:(h + 1) * dv] for h in range(H)], axis=0)

    # ---- additive mask bias built ONCE from the (B, S) key mask --------------
    km = km_ref[...]                                    # (B, S) int32, nonzero = masked
    bias = jnp.where(km != 0, -1e30, 0.0).astype(jnp.float32)     # (B, S)
    bias_hb = jnp.concatenate([bias] * H, axis=0)       # (H*B, S): row h*B+b -> batch b

    # ---- scores + softmax for all heads/batches in one batched matmul --------
    scores = jnp.einsum('nqd,nkd->nqk', qh.astype(bf16), kh.astype(bf16),
                        preferred_element_type=jnp.float32)       # (H*B, S, S)
    scores = scores + bias_hb[:, None, :]
    m = jnp.max(scores, axis=-1, keepdims=True)
    e = jnp.exp(scores - m)
    p = e / jnp.sum(e, axis=-1, keepdims=True)
    # attention weights returned by the module (attn dropout = identity in eval);
    # layout (n_head*B, S, S) with index h*B + b, same as the PyTorch code.
    attn_ref[...] = p

    # ---- context = P @ V (batched), concat heads, single output projection ---
    ctx = jnp.einsum('nqk,nkd->nqd', p.astype(bf16), vh.astype(bf16),
                     preferred_element_type=jnp.float32)          # (H*B, S, dv)
    ctx_cat = jnp.concatenate([ctx[h * B:(h + 1) * B] for h in range(H)], axis=-1)
    ctx2 = ctx_cat.reshape(B * S, nv)                              # (B*S, H*dv)
    o = jnp.dot(ctx2.astype(bf16), wfc_ref[...],
                preferred_element_type=jnp.float32) + bfc_ref[...]

    # ---- output dropout (eval) = identity; residual + LayerNorm (eps=1e-5) ---
    y = o + residual
    mu = jnp.mean(y, axis=-1, keepdims=True)
    var = jnp.mean((y - mu) ** 2, axis=-1, keepdims=True)
    y = (y - mu) * jax.lax.rsqrt(var + 1e-5) * gamma_ref[...] + beta_ref[...]

    # ---- lane-dense store: pack the D-wide token rows into a (B, S*D) slab ---
    y3 = y.reshape(B, S, D)
    out_ref[...] = jnp.concatenate([y3[:, s] for s in range(S)], axis=-1)   # (B, S*D)


# ----------------------------------------------------------------------------
# One-time parameter prep: fuse Q|K|V weights/biases, store matmul weights bf16
# (halves weight DMA bytes; MXU still accumulates in f32).
# ----------------------------------------------------------------------------
def prepare_params(p):
    return {
        "wqkv": jnp.concatenate([p["wq"], p["wk"], p["wv"]], axis=1).astype(jnp.bfloat16),
        "bqkv": jnp.concatenate([p["bq"], p["bk"], p["bv"]], axis=1).astype(jnp.float32),
        "wfc": p["wfc"].astype(jnp.bfloat16),
        "bfc": p["bfc"].astype(jnp.float32),
        "gamma": p["gamma"].astype(jnp.float32),
        "beta": p["beta"].astype(jnp.float32),
    }


def multi_head_attention_pallas(x, key_mask, prepped, *, n_head, d_k, d_v):
    """MultiHeadAttention.forward for self-attention (q = k = v = x) with a
    key-padding mask (nonzero key-mask entries are masked out, exactly like
    `attn.masked_fill(mask, -inf)` with the encoder's broadcast key mask).
    Returns (output, attn)."""
    # TODO(synk): cross-attention (q != k/v) or an arbitrary per-query (B,S,S)
    # mask would need separate K/V inputs / a dense int8 mask input; this kernel
    # covers the encoder's self-attention + broadcast key-padding-mask usage.
    # TODO(synk): for realistic S (>= 1K, esp. on v7x's 64 MiB VMEM), add a
    # KV-tile grid axis with online softmax so (S,S) scores are never materialized.
    B, S, D = x.shape
    H = n_head

    x_flat = x.reshape(B * S, D)        # free metadata reshape outside the kernel
    km = key_mask.astype(jnp.int32)

    kernel = functools.partial(mha_kernel, n_head=H, d_k=d_k, d_v=d_v, batch=B, seq=S)

    def full_block(shape):
        if len(shape) == 2:
            return pl.BlockSpec(shape, lambda i: (0, 0))
        elif len(shape) == 3:
            return pl.BlockSpec(shape, lambda i: (0, 0, 0))
        raise ValueError(f"unsupported rank: {shape}")

    inputs = (x_flat, km, prepped["wqkv"], prepped["bqkv"], prepped["wfc"],
              prepped["bfc"], prepped["gamma"], prepped["beta"])

    out_flat, attn = pl.pallas_call(
        kernel,
        grid=(1,),                       # single grid step: whole batch fused
        in_specs=[full_block(a.shape) for a in inputs],
        out_specs=(full_block((B, S * D)), full_block((H * B, S, S))),
        out_shape=(jax.ShapeDtypeStruct((B, S * D), jnp.float32),
                   jax.ShapeDtypeStruct((H * B, S, S), jnp.float32)),
        compiler_params=pltpu.CompilerParams(dimension_semantics=("arbitrary",)),
    )(*inputs)

    return out_flat.reshape(B, S, D), attn


# ----------------------------------------------------------------------------
# Parameter init (mirrors the PyTorch module's shapes / init; weights stored
# pre-transposed as (in, out)).
# ----------------------------------------------------------------------------
def init_mha_params(key, d_model, n_head, d_k, d_v):
    ks = jax.random.split(key, 8)
    std_qk = np.sqrt(2.0 / (d_model + d_k))
    std_v = np.sqrt(2.0 / (d_model + d_v))
    std_fc = np.sqrt(2.0 / (n_head * d_v + d_model))   # xavier_normal
    return {
        "wq": jax.random.normal(ks[0], (d_model, n_head * d_k), jnp.float32) * std_qk,
        "bq": jax.random.normal(ks[1], (1, n_head * d_k), jnp.float32) * 0.02,
        "wk": jax.random.normal(ks[2], (d_model, n_head * d_k), jnp.float32) * std_qk,
        "bk": jax.random.normal(ks[3], (1, n_head * d_k), jnp.float32) * 0.02,
        "wv": jax.random.normal(ks[4], (d_model, n_head * d_v), jnp.float32) * std_v,
        "bv": jax.random.normal(ks[5], (1, n_head * d_v), jnp.float32) * 0.02,
        "wfc": jax.random.normal(ks[6], (n_head * d_v, d_model), jnp.float32) * std_fc,
        "bfc": jax.random.normal(ks[7], (1, d_model), jnp.float32) * 0.02,
        "gamma": jnp.ones((1, d_model), jnp.float32),
        "beta": jnp.zeros((1, d_model), jnp.float32),
    }


# ----------------------------------------------------------------------------
# Pure-JAX reference that mirrors the PyTorch module (eval mode), using the
# same bf16-at-the-MXU / f32-elsewhere precision policy as the kernel.
# ----------------------------------------------------------------------------
def multi_head_attention_ref(x, key_mask, p, *, n_head, d_k, d_v):
    B, S, D = x.shape
    H = n_head
    bf16 = jnp.bfloat16
    temperature = np.power(d_k, 0.5)

    def mm(a, w):
        return jnp.dot(a.astype(bf16), w.astype(bf16), preferred_element_type=jnp.float32)

    residual = x
    xf = x.reshape(B * S, D)
    q = (mm(xf, p["wq"]) + p["bq"]).reshape(B, S, H, d_k)
    k = (mm(xf, p["wk"]) + p["bk"]).reshape(B, S, H, d_k)
    v = (mm(xf, p["wv"]) + p["bv"]).reshape(B, S, H, d_v)
    q = q.transpose(2, 0, 1, 3).reshape(H * B, S, d_k)
    k = k.transpose(2, 0, 1, 3).reshape(H * B, S, d_k)
    v = v.transpose(2, 0, 1, 3).reshape(H * B, S, d_v)

    mask = jnp.broadcast_to((key_mask != 0)[:, None, :], (B, S, S))
    mask = jnp.tile(mask, (H, 1, 1))                    # mask.repeat(n_head, 1, 1)

    attn = jnp.einsum('nqd,nkd->nqk', q.astype(bf16), k.astype(bf16),
                      preferred_element_type=jnp.float32) / temperature
    attn = jnp.where(mask, -1e30, attn)                 # masked_fill(mask, -inf) (finite)
    attn = jax.nn.softmax(attn, axis=-1)                # attn dropout: eval identity

    out = jnp.einsum('nqk,nkd->nqd', attn.astype(bf16), v.astype(bf16),
                     preferred_element_type=jnp.float32)
    out = out.reshape(H, B, S, d_v).transpose(1, 2, 0, 3).reshape(B * S, H * d_v)
    out = (mm(out, p["wfc"]) + p["bfc"]).reshape(B, S, D)   # output dropout: identity

    y = out + residual
    mu = jnp.mean(y, axis=-1, keepdims=True)
    var = jnp.mean((y - mu) ** 2, axis=-1, keepdims=True)
    y = (y - mu) / jnp.sqrt(var + 1e-5) * p["gamma"] + p["beta"]
    return y, attn


# ----------------------------------------------------------------------------
if __name__ == "__main__":
    B, S = 2, 8
    d_model = 32
    n_head, d_k, d_v = 2, 16, 16

    key = jax.random.PRNGKey(0)
    kx, kp = jax.random.split(key)

    x = jax.random.normal(kx, (B, S, d_model), jnp.float32)
    # key-padding mask: nonzero = masked key (the encoder builds its (B,S,S)
    # slf_attn_mask by broadcasting this over the query dim). Every batch row
    # keeps at least one visible key, so -1e30 vs -inf makes no difference.
    key_mask = jnp.array([[0, 0, 1, 0, 1, 0, 1, 1],
                          [1, 0, 0, 1, 0, 1, 0, 1]], dtype=jnp.int32)

    params = init_mha_params(kp, d_model, n_head, d_k, d_v)
    prepped = prepare_params(params)

    out, attn = multi_head_attention_pallas(
        x, key_mask, prepped, n_head=n_head, d_k=d_k, d_v=d_v)
    out = jax.block_until_ready(out)
    attn = jax.block_until_ready(attn)

    ref_out, ref_attn = multi_head_attention_ref(
        x, key_mask, params, n_head=n_head, d_k=d_k, d_v=d_v)
    ref_out = jax.block_until_ready(ref_out)
    ref_attn = jax.block_until_ready(ref_attn)

    assert out.shape == (B, S, d_model)
    assert attn.shape == (n_head * B, S, S)
    assert bool(jnp.all(jnp.isfinite(out)))
    assert np.allclose(np.asarray(out), np.asarray(ref_out), atol=2e-2, rtol=2e-2)
    assert np.allclose(np.asarray(attn), np.asarray(ref_attn), atol=2e-2, rtol=2e-2)
    print("KERNEL_OK")
</pallas_src>

<mosaic_0001>
module attributes {stable_mosaic.version = 11 : i64} {
  func.func @mha_kernel(%arg0: i32, %arg1: memref<16x32xf32, #tpu.memory_space<vmem>>, %arg2: memref<2x8xi32, #tpu.memory_space<vmem>>, %arg3: memref<32x96xbf16, #tpu.memory_space<vmem>>, %arg4: memref<1x96xf32, #tpu.memory_space<vmem>>, %arg5: memref<32x32xbf16, #tpu.memory_space<vmem>>, %arg6: memref<1x32xf32, #tpu.memory_space<vmem>>, %arg7: memref<1x32xf32, #tpu.memory_space<vmem>>, %arg8: memref<1x32xf32, #tpu.memory_space<vmem>>, %arg9: memref<2x256xf32, #tpu.memory_space<vmem>>, %arg10: memref<4x8x8xf32, #tpu.memory_space<vmem>>) attributes {dimension_semantics = [#tpu.dimension_semantics<arbitrary>], iteration_bounds = array<i64: 1>, scalar_prefetch = 0 : i64, scratch_operands = 0 : i64, tpu.core_type = #tpu.core_type<tc>, window_params = [{pipeline_mode = #tpu.pipeline_mode<synchronous>, transform_indices = @transform_0, window_bounds = array<i64: 16, 32>}, {pipeline_mode = #tpu.pipeline_mode<synchronous>, transform_indices = @transform_1, window_bounds = array<i64: 2, 8>}, {pipeline_mode = #tpu.pipeline_mode<synchronous>, transform_indices = @transform_2, window_bounds = array<i64: 32, 96>}, {pipeline_mode = #tpu.pipeline_mode<synchronous>, transform_indices = @transform_3, window_bounds = array<i64: 1, 96>}, {pipeline_mode = #tpu.pipeline_mode<synchronous>, transform_indices = @transform_4, window_bounds = array<i64: 32, 32>}, {pipeline_mode = #tpu.pipeline_mode<synchronous>, transform_indices = @transform_5, window_bounds = array<i64: 1, 32>}, {pipeline_mode = #tpu.pipeline_mode<synchronous>, transform_indices = @transform_6, window_bounds = array<i64: 1, 32>}, {pipeline_mode = #tpu.pipeline_mode<synchronous>, transform_indices = @transform_7, window_bounds = array<i64: 1, 32>}, {pipeline_mode = #tpu.pipeline_mode<synchronous>, transform_indices = @transform_8, window_bounds = array<i64: 2, 256>}, {pipeline_mode = #tpu.pipeline_mode<synchronous>, transform_indices = @transform_9, window_bounds = array<i64: 4, 8, 8>}]} {
    %c0 = arith.constant 0 : index
    %c0_0 = arith.constant 0 : index
    %0 = vector.load %arg1[%c0, %c0_0] : memref<16x32xf32, #tpu.memory_space<vmem>>, vector<16x32xf32>
    %1 = arith.truncf %0 : vector<16x32xf32> to vector<16x32xbf16>
    %c0_1 = arith.constant 0 : index
    %c0_2 = arith.constant 0 : index
    %2 = vector.load %arg3[%c0_1, %c0_2] : memref<32x96xbf16, #tpu.memory_space<vmem>>, vector<32x96xbf16>
    %cst = arith.constant dense<0.000000e+00> : vector<16x96xf32>
    %3 = tpu.matmul %1, %2, %cst {dimension_numbers = #tpu.dot_dimension_numbers<[1], [0], [0], [1], [0, 0, 1, 1], [], []>} : vector<16x32xbf16>, vector<32x96xbf16>, vector<16x96xf32> -> vector<16x96xf32>
    %c0_3 = arith.constant 0 : index
    %c0_4 = arith.constant 0 : index
    %4 = vector.load %arg4[%c0_3, %c0_4] : memref<1x96xf32, #tpu.memory_space<vmem>>, vector<1x96xf32>
    %5 = vector.broadcast %4 : vector<1x96xf32> to vector<16x96xf32>
    %6 = arith.addf %3, %5 : vector<16x96xf32>
    %7 = vector.extract_strided_slice %6 {offsets = [0, 0], sizes = [16, 32], strides = [1, 1]} : vector<16x96xf32> to vector<16x32xf32>
    %cst_5 = arith.constant 2.500000e-01 : f32
    %8 = vector.broadcast %cst_5 : f32 to vector<16x32xf32>
    %9 = arith.mulf %7, %8 : vector<16x32xf32>
    %10 = vector.extract_strided_slice %6 {offsets = [0, 32], sizes = [16, 32], strides = [1, 1]} : vector<16x96xf32> to vector<16x32xf32>
    %11 = vector.extract_strided_slice %6 {offsets = [0, 64], sizes = [16, 32], strides = [1, 1]} : vector<16x96xf32> to vector<16x32xf32>
    %12 = vector.shape_cast %9 : vector<16x32xf32> to vector<2x8x32xf32>
    %13 = vector.shape_cast %10 : vector<16x32xf32> to vector<2x8x32xf32>
    %14 = vector.shape_cast %11 : vector<16x32xf32> to vector<2x8x32xf32>
    %15 = vector.extract_strided_slice %12 {offsets = [0, 0, 0], sizes = [2, 8, 16], strides = [1, 1, 1]} : vector<2x8x32xf32> to vector<2x8x16xf32>
    %16 = vector.extract_strided_slice %12 {offsets = [0, 0, 16], sizes = [2, 8, 16], strides = [1, 1, 1]} : vector<2x8x32xf32> to vector<2x8x16xf32>
    %17 = tpu.concatenate %15, %16 in 0 : vector<2x8x16xf32>, vector<2x8x16xf32> -> vector<4x8x16xf32>
    %18 = vector.extract_strided_slice %13 {offsets = [0, 0, 0], sizes = [2, 8, 16], strides = [1, 1, 1]} : vector<2x8x32xf32> to vector<2x8x16xf32>
    %19 = vector.extract_strided_slice %13 {offsets = [0, 0, 16], sizes = [2, 8, 16], strides = [1, 1, 1]} : vector<2x8x32xf32> to vector<2x8x16xf32>
    %20 = tpu.concatenate %18, %19 in 0 : vector<2x8x16xf32>, vector<2x8x16xf32> -> vector<4x8x16xf32>
    %21 = vector.extract_strided_slice %14 {offsets = [0, 0, 0], sizes = [2, 8, 16], strides = [1, 1, 1]} : vector<2x8x32xf32> to vector<2x8x16xf32>
    %22 = vector.extract_strided_slice %14 {offsets = [0, 0, 16], sizes = [2, 8, 16], strides = [1, 1, 1]} : vector<2x8x32xf32> to vector<2x8x16xf32>
    %23 = tpu.concatenate %21, %22 in 0 : vector<2x8x16xf32>, vector<2x8x16xf32> -> vector<4x8x16xf32>
    %c0_6 = arith.constant 0 : index
    %c0_7 = arith.constant 0 : index
    %24 = vector.load %arg2[%c0_6, %c0_7] : memref<2x8xi32, #tpu.memory_space<vmem>>, vector<2x8xi32>
    %c0_i32 = arith.constant 0 : i32
    %25 = vector.broadcast %c0_i32 : i32 to vector<2x8xi32>
    %26 = arith.cmpi ne, %24, %25 : vector<2x8xi32>
    %cst_8 = arith.constant -1.000000e+30 : f32
    %cst_9 = arith.constant 0.000000e+00 : f32
    %27 = vector.broadcast %cst_8 : f32 to vector<2x8xf32>
    %28 = vector.broadcast %cst_9 : f32 to vector<2x8xf32>
    %29 = arith.select %26, %27, %28 : vector<2x8xi1>, vector<2x8xf32>
    %30 = tpu.concatenate %29, %29 in 0 : vector<2x8xf32>, vector<2x8xf32> -> vector<4x8xf32>
    %31 = arith.truncf %17 : vector<4x8x16xf32> to vector<4x8x16xbf16>
    %32 = arith.truncf %20 : vector<4x8x16xf32> to vector<4x8x16xbf16>
    "tpu.trace_start"() <{level = 10 : i32, message = "nqd,nkd->nqk"}> : () -> ()
    %cst_10 = arith.constant dense<0.000000e+00> : vector<4x8x8xf32>
    %33 = tpu.matmul %31, %32, %cst_10 {dimension_numbers = #tpu.dot_dimension_numbers<[2], [2], [1], [1], [0, 0, 0, 1, 1, 1], [0], [0]>} : vector<4x8x16xbf16>, vector<4x8x16xbf16>, vector<4x8x8xf32> -> vector<4x8x8xf32>
    "tpu.trace_stop"() : () -> ()
    %34 = vector.shape_cast %30 : vector<4x8xf32> to vector<4x1x8xf32>
    %35 = vector.broadcast %34 : vector<4x1x8xf32> to vector<4x8x8xf32>
    %36 = arith.addf %33, %35 : vector<4x8x8xf32>
    %cst_11 = arith.constant dense<0xFF800000> : vector<4x8xf32>
    %37 = vector.multi_reduction <maximumf>, %36, %cst_11 [2] : vector<4x8x8xf32> to vector<4x8xf32>
    %38 = vector.shape_cast %37 : vector<4x8xf32> to vector<4x8x1xf32>
    %39 = vector.broadcast %38 : vector<4x8x1xf32> to vector<4x8x8xf32>
    %40 = arith.subf %36, %39 : vector<4x8x8xf32>
    %41 = math.exp %40 : vector<4x8x8xf32>
    %cst_12 = arith.constant dense<0.000000e+00> : vector<4x8xf32>
    %42 = vector.multi_reduction <add>, %41, %cst_12 [2] : vector<4x8x8xf32> to vector<4x8xf32>
    %43 = vector.shape_cast %42 : vector<4x8xf32> to vector<4x8x1xf32>
    %44 = vector.broadcast %43 : vector<4x8x1xf32> to vector<4x8x8xf32>
    %45 = arith.divf %41, %44 : vector<4x8x8xf32>
    %c0_13 = arith.constant 0 : index
    %c0_14 = arith.constant 0 : index
    %c0_15 = arith.constant 0 : index
    %46 = vector.load %arg10[%c0_13, %c0_14, %c0_15] : memref<4x8x8xf32, #tpu.memory_space<vmem>>, vector<4x8x8xf32>
    tpu.vector_store %arg10[%c0_13, %c0_14, %c0_15], %45 {strides = array<i32>} : memref<4x8x8xf32, #tpu.memory_space<vmem>>, vector<4x8x8xf32>,
    %47 = arith.truncf %45 : vector<4x8x8xf32> to vector<4x8x8xbf16>
    %48 = arith.truncf %23 : vector<4x8x16xf32> to vector<4x8x16xbf16>
    "tpu.trace_start"() <{level = 10 : i32, message = "nqk,nkd->nqd"}> : () -> ()
    %cst_16 = arith.constant dense<0.000000e+00> : vector<4x8x16xf32>
    %49 = tpu.matmul %47, %48, %cst_16 {dimension_numbers = #tpu.dot_dimension_numbers<[2], [1], [1], [2], [0, 0, 0, 1, 1, 2], [0], [0]>} : vector<4x8x8xbf16>, vector<4x8x16xbf16>, vector<4x8x16xf32> -> vector<4x8x16xf32>
    "tpu.trace_stop"() : () -> ()
    %50 = vector.extract_strided_slice %49 {offsets = [0, 0, 0], sizes = [2, 8, 16], strides = [1, 1, 1]} : vector<4x8x16xf32> to vector<2x8x16xf32>
    %51 = vector.extract_strided_slice %49 {offsets = [2, 0, 0], sizes = [2, 8, 16], strides = [1, 1, 1]} : vector<4x8x16xf32> to vector<2x8x16xf32>
    %52 = tpu.concatenate %50, %51 in 2 : vector<2x8x16xf32>, vector<2x8x16xf32> -> vector<2x8x32xf32>
    %53 = vector.shape_cast %52 : vector<2x8x32xf32> to vector<16x32xf32>
    %54 = arith.truncf %53 : vector<16x32xf32> to vector<16x32xbf16>
    %c0_17 = arith.constant 0 : index
    %c0_18 = arith.constant 0 : index
    %55 = vector.load %arg5[%c0_17, %c0_18] : memref<32x32xbf16, #tpu.memory_space<vmem>>, vector<32x32xbf16>
    %cst_19 = arith.constant dense<0.000000e+00> : vector<16x32xf32>
    %56 = tpu.matmul %54, %55, %cst_19 {dimension_numbers = #tpu.dot_dimension_numbers<[1], [0], [0], [1], [0, 0, 1, 1], [], []>} : vector<16x32xbf16>, vector<32x32xbf16>, vector<16x32xf32> -> vector<16x32xf32>
    %c0_20 = arith.constant 0 : index
    %c0_21 = arith.constant 0 : index
    %57 = vector.load %arg6[%c0_20, %c0_21] : memref<1x32xf32, #tpu.memory_space<vmem>>, vector<1x32xf32>
    %58 = vector.broadcast %57 : vector<1x32xf32> to vector<16x32xf32>
    %59 = arith.addf %56, %58 : vector<16x32xf32>
    %60 = arith.addf %59, %0 : vector<16x32xf32>
    %cst_22 = arith.constant dense<0.000000e+00> : vector<16xf32>
    %61 = vector.multi_reduction <add>, %60, %cst_22 [1] : vector<16x32xf32> to vector<16xf32>
    %62 = vector.shape_cast %61 : vector<16xf32> to vector<16x1xf32>
    %cst_23 = arith.constant 3.200000e+01 : f32
    %63 = vector.broadcast %cst_23 : f32 to vector<16x1xf32>
    %64 = arith.divf %62, %63 : vector<16x1xf32>
    %65 = vector.broadcast %64 : vector<16x1xf32> to vector<16x32xf32>
    %66 = arith.subf %60, %65 : vector<16x32xf32>
    %67 = arith.mulf %66, %66 : vector<16x32xf32>
    %cst_24 = arith.constant dense<0.000000e+00> : vector<16xf32>
    %68 = vector.multi_reduction <add>, %67, %cst_24 [1] : vector<16x32xf32> to vector<16xf32>
    %69 = vector.shape_cast %68 : vector<16xf32> to vector<16x1xf32>
    %cst_25 = arith.constant 3.200000e+01 : f32
    %70 = vector.broadcast %cst_25 : f32 to vector<16x1xf32>
    %71 = arith.divf %69, %70 : vector<16x1xf32>
    %72 = vector.broadcast %64 : vector<16x1xf32> to vector<16x32xf32>
    %73 = arith.subf %60, %72 : vector<16x32xf32>
    %cst_26 = arith.constant 9.99999974E-6 : f32
    %74 = vector.broadcast %cst_26 : f32 to vector<16x1xf32>
    %75 = arith.addf %71, %74 : vector<16x1xf32>
    %76 = math.rsqrt %75 : vector<16x1xf32>
    %77 = vector.broadcast %76 : vector<16x1xf32> to vector<16x32xf32>
    %78 = arith.mulf %73, %77 : vector<16x32xf32>
    %c0_27 = arith.constant 0 : index
    %c0_28 = arith.constant 0 : index
    %79 = vector.load %arg7[%c0_27, %c0_28] : memref<1x32xf32, #tpu.memory_space<vmem>>, vector<1x32xf32>
    %80 = vector.broadcast %79 : vector<1x32xf32> to vector<16x32xf32>
    %81 = arith.mulf %78, %80 : vector<16x32xf32>
    %c0_29 = arith.constant 0 : index
    %c0_30 = arith.constant 0 : index
    %82 = vector.load %arg8[%c0_29, %c0_30] : memref<1x32xf32, #tpu.memory_space<vmem>>, vector<1x32xf32>
    %83 = vector.broadcast %82 : vector<1x32xf32> to vector<16x32xf32>
    %84 = arith.addf %81, %83 : vector<16x32xf32>
    %85 = vector.shape_cast %84 : vector<16x32xf32> to vector<2x8x32xf32>
    %86 = vector.extract_strided_slice %85 {offsets = [0, 0, 0], sizes = [2, 1, 32], strides = [1, 1, 1]} : vector<2x8x32xf32> to vector<2x1x32xf32>
    %87 = vector.shape_cast %86 : vector<2x1x32xf32> to vector<2x32xf32>
    %88 = vector.extract_strided_slice %85 {offsets = [0, 1, 0], sizes = [2, 1, 32], strides = [1, 1, 1]} : vector<2x8x32xf32> to vector<2x1x32xf32>
    %89 = vector.shape_cast %88 : vector<2x1x32xf32> to vector<2x32xf32>
    %90 = vector.extract_strided_slice %85 {offsets = [0, 2, 0], sizes = [2, 1, 32], strides = [1, 1, 1]} : vector<2x8x32xf32> to vector<2x1x32xf32>
    %91 = vector.shape_cast %90 : vector<2x1x32xf32> to vector<2x32xf32>
    %92 = vector.extract_strided_slice %85 {offsets = [0, 3, 0], sizes = [2, 1, 32], strides = [1, 1, 1]} : vector<2x8x32xf32> to vector<2x1x32xf32>
    %93 = vector.shape_cast %92 : vector<2x1x32xf32> to vector<2x32xf32>
    %94 = vector.extract_strided_slice %85 {offsets = [0, 4, 0], sizes = [2, 1, 32], strides = [1, 1, 1]} : vector<2x8x32xf32> to vector<2x1x32xf32>
    %95 = vector.shape_cast %94 : vector<2x1x32xf32> to vector<2x32xf32>
    %96 = vector.extract_strided_slice %85 {offsets = [0, 5, 0], sizes = [2, 1, 32], strides = [1, 1, 1]} : vector<2x8x32xf32> to vector<2x1x32xf32>
    %97 = vector.shape_cast %96 : vector<2x1x32xf32> to vector<2x32xf32>
    %98 = vector.extract_strided_slice %85 {offsets = [0, 6, 0], sizes = [2, 1, 32], strides = [1, 1, 1]} : vector<2x8x32xf32> to vector<2x1x32xf32>
    %99 = vector.shape_cast %98 : vector<2x1x32xf32> to vector<2x32xf32>
    %100 = vector.extract_strided_slice %85 {offsets = [0, 7, 0], sizes = [2, 1, 32], strides = [1, 1, 1]} : vector<2x8x32xf32> to vector<2x1x32xf32>
    %101 = vector.shape_cast %100 : vector<2x1x32xf32> to vector<2x32xf32>
    %102 = tpu.concatenate %87, %89, %91, %93, %95, %97, %99, %101 in 1 : vector<2x32xf32>, vector<2x32xf32>, vector<2x32xf32>, vector<2x32xf32>, vector<2x32xf32>, vector<2x32xf32>, vector<2x32xf32>, vector<2x32xf32> -> vector<2x256xf32>
    %c0_31 = arith.constant 0 : index
    %c0_32 = arith.constant 0 : index
    %103 = vector.load %arg9[%c0_31, %c0_32] : memref<2x256xf32, #tpu.memory_space<vmem>>, vector<2x256xf32>
    tpu.vector_store %arg9[%c0_31, %c0_32], %102 {strides = array<i32>} : memref<2x256xf32, #tpu.memory_space<vmem>>, vector<2x256xf32>,
    return
  }
  func.func @transform_0(%arg0: i32) -> (i32, i32) {
    %c0_i32 = arith.constant 0 : i32
    %c0_i32_0 = arith.constant 0 : i32
    %c0_i32_1 = arith.constant 0 : i32
    return %c0_i32, %c0_i32_0 : i32, i32
  }
  func.func @transform_1(%arg0: i32) -> (i32, i32) {
    %c0_i32 = arith.constant 0 : i32
    %c0_i32_0 = arith.constant 0 : i32
    %c0_i32_1 = arith.constant 0 : i32
    return %c0_i32, %c0_i32_0 : i32, i32
  }
  func.func @transform_2(%arg0: i32) -> (i32, i32) {
    %c0_i32 = arith.constant 0 : i32
    %c0_i32_0 = arith.constant 0 : i32
    %c0_i32_1 = arith.constant 0 : i32
    return %c0_i32, %c0_i32_0 : i32, i32
  }
  func.func @transform_3(%arg0: i32) -> (i32, i32) {
    %c0_i32 = arith.constant 0 : i32
    %c0_i32_0 = arith.constant 0 : i32
    %c0_i32_1 = arith.constant 0 : i32
    return %c0_i32, %c0_i32_0 : i32, i32
  }
  func.func @transform_4(%arg0: i32) -> (i32, i32) {
    %c0_i32 = arith.constant 0 : i32
    %c0_i32_0 = arith.constant 0 : i32
    %c0_i32_1 = arith.constant 0 : i32
    return %c0_i32, %c0_i32_0 : i32, i32
  }
  func.func @transform_5(%arg0: i32) -> (i32, i32) {
    %c0_i32 = arith.constant 0 : i32
    %c0_i32_0 = arith.constant 0 : i32
    %c0_i32_1 = arith.constant 0 : i32
    return %c0_i32, %c0_i32_0 : i32, i32
  }
  func.func @transform_6(%arg0: i32) -> (i32, i32) {
    %c0_i32 = arith.constant 0 : i32
    %c0_i32_0 = arith.constant 0 : i32
    %c0_i32_1 = arith.constant 0 : i32
    return %c0_i32, %c0_i32_0 : i32, i32
  }
  func.func @transform_7(%arg0: i32) -> (i32, i32) {
    %c0_i32 = arith.constant 0 : i32
    %c0_i32_0 = arith.constant 0 : i32
    %c0_i32_1 = arith.constant 0 : i32
    return %c0_i32, %c0_i32_0 : i32, i32
  }
  func.func @transform_8(%arg0: i32) -> (i32, i32) {
    %c0_i32 = arith.constant 0 : i32
    %c0_i32_0 = arith.constant 0 : i32
    %c0_i32_1 = arith.constant 0 : i32
    return %c0_i32, %c0_i32_0 : i32, i32
  }
  func.func @transform_9(%arg0: i32) -> (i32, i32, i32) {
    %c0_i32 = arith.constant 0 : i32
    %c0_i32_0 = arith.constant 0 : i32
    %c0_i32_1 = arith.constant 0 : i32
    %c0_i32_2 = arith.constant 0 : i32
    return %c0_i32, %c0_i32_0, %c0_i32_1 : i32, i32, i32
  }
}

</mosaic_0001>

<llo_original>
// kernel: tpu_custom_call.1
$region0: #{tpu_custom_call.1}
  #allocation0 [shape = 'u32[]', space=smem, size = 0x4, offset = 0x4, fixed_abs, tag = 'smem constant byte address 0x4 - core index']
  #allocation1 [shape = 'u32[72,128]{1,0:T(1,128)}', space=vmem, size = 0x9000, scoped, tag = 'internal scratch']
  %s0 = inlined_call_operand.hbm [shape: f32[16,32], index: 0, kind: input, shape index: {}]
  %s1 = inlined_call_operand.hbm [shape: s32[2,8], index: 1, kind: input, shape index: {}]
  %s2 = inlined_call_operand.hbm [shape: bf16[32,96], index: 2, kind: input, shape index: {}]
  %s3 = inlined_call_operand.vmem [shape: f32[1,96], index: 3, kind: input, shape index: {}]
  %s4 = inlined_call_operand.hbm [shape: bf16[32,32], index: 4, kind: input, shape index: {}]
  %s5 = inlined_call_operand.vmem [shape: f32[1,32], index: 5, kind: input, shape index: {}]
  %s6 = inlined_call_operand.vmem [shape: f32[1,32], index: 6, kind: input, shape index: {}]
  %s7 = inlined_call_operand.vmem [shape: f32[1,32], index: 7, kind: input, shape index: {}]
  %s8 = inlined_call_operand.hbm [shape: f32[2,256], index: 8, kind: output, shape index: {0}]
  %s9 = inlined_call_operand.hbm [shape: f32[4,8,8], index: 9, kind: output, shape index: {1}]
  %10 = xla_tuple %s8, %s9
  %s11 = sld [smem:[#allocation0]]
  $region66: #{tpu_custom_call.1} parent=0
    _
  %s13 = ssub.s32 1, %s11
  %s14 = scalar_select 0, %s13, %s11
  $region1: #{tpu_custom_call.1} parent=0
    #allocation2 [shape = 'u8[8192]{0}', space=vmem, size = 0x2000, scoped, tag = 'input window, operand 0, single buffered']
    #allocation3 [shape = 's32[1]{0}', space=sflag, size = 0x4, scoped, tag = 'scoped memory for tpu_custom_call.1']
    #allocation4 [shape = 's32[1]{0}', space=sflag, size = 0x4, scoped, tag = 'scoped memory for tpu_custom_call.1']
    #allocation5 [shape = 'u8[1024]{0}', space=vmem, size = 0x400, scoped, tag = 'input window, operand 1, single buffered']
    #allocation6 [shape = 's32[1]{0}', space=sflag, size = 0x4, scoped, tag = 'scoped memory for tpu_custom_call.1']
    #allocation7 [shape = 'u8[8192]{0}', space=vmem, size = 0x2000, scoped, tag = 'input window, operand 2, single buffered']
    #allocation8 [shape = 'u8[8192]{0}', space=vmem, size = 0x2000, scoped, tag = 'input window, operand 4, single buffered']
    #allocation9 [shape = 's32[1]{0}', space=sflag, size = 0x4, scoped, tag = 'scoped memory for tpu_custom_call.1']
    #allocation10 [shape = 'u8[2048]{0}', space=vmem, size = 0x800, scoped, tag = 'output window, operand 0, single buffered']
    #allocation11 [shape = 'u8[16384]{0}', space=vmem, size = 0x4000, scoped, tag = 'output window, operand 1, single buffered']
    #allocation12 [shape = 's32[1]{0}', space=sflag, size = 0x4, scoped, tag = 'scoped memory for tpu_custom_call.1']
    %15 = vsyncpa [#allocation3], 0
    %16 = vsyncpa [#allocation6], 0
    %17 = vsyncpa [#allocation9], 0
    %18 = vsyncpa [#allocation4], 0
    %19 = vsyncpa [#allocation12], 0
    // Predicated region
    $region2: #{tpu_custom_call.1} parent=1 // pred_check
      _
    $region3: #{tpu_custom_call.1} parent=1 // pred_check_branch
      %21 = sbr.rel (0) target = $region5
    $region4: #{tpu_custom_call.1} parent=1 // pred_region
      %23 = vsyncadd [#allocation3], 0
      %s24 = sshll.u32 %s0, 4
      %s25 = int_to_ptr.hbm [resolvable:$true] %s24
      %s26 = sshll.u32 [#allocation2], 4
      %s27 = int_to_ptr.vmem [resolvable:$true] %s26
      %32 = dma.hbm_to_vmem [thread:$0]  %s25, 256, %s27, [#allocation3], 128, 128, 8
    $region5: #{tpu_custom_call.1} parent=1 // pred_fallthru
      _
    // Predicated region
    $region6: #{tpu_custom_call.1} parent=1 // pred_check
      _
    $region7: #{tpu_custom_call.1} parent=1 // pred_check_branch
      %34 = sbr.rel (0) target = $region9
    $region8: #{tpu_custom_call.1} parent=1 // pred_region
      %36 = vsyncadd [#allocation6], 0
      %s38 = sshll.u32 %s1, 4
      %s39 = int_to_ptr.hbm [resolvable:$true] %s38
      %s40 = sshll.u32 [#allocation5], 4
      %s41 = int_to_ptr.vmem [resolvable:$true] %s40
      %43 = dma.hbm_to_vmem [thread:$0]  %s39, 32, %s41, [#allocation6]
    $region9: #{tpu_custom_call.1} parent=1 // pred_fallthru
      _
    // Predicated region
    $region10: #{tpu_custom_call.1} parent=1 // pred_check
      _
    $region11: #{tpu_custom_call.1} parent=1 // pred_check_branch
      %45 = sbr.rel (0) target = $region13
    $region12: #{tpu_custom_call.1} parent=1 // pred_region
      %47 = vsyncadd [#allocation6], 0
      %s48 = sshll.u32 %s2, 4
      %s49 = int_to_ptr.hbm [resolvable:$true] %s48
      %s50 = sshll.u32 [#allocation7], 4
      %s51 = int_to_ptr.vmem [resolvable:$true] %s50
      %56 = dma.hbm_to_vmem [thread:$0]  %s49, 256, %s51, [#allocation6], 64, 64, 4
    $region13: #{tpu_custom_call.1} parent=1 // pred_fallthru
      _
    // Predicated region
    $region14: #{tpu_custom_call.1} parent=1 // pred_check
      _
    $region15: #{tpu_custom_call.1} parent=1 // pred_check_branch
      %58 = sbr.rel (0) target = $region17
    $region16: #{tpu_custom_call.1} parent=1 // pred_region
      _
    $region17: #{tpu_custom_call.1} parent=1 // pred_fallthru
      _
    // Predicated region
    $region18: #{tpu_custom_call.1} parent=1 // pred_check
      _
    $region19: #{tpu_custom_call.1} parent=1 // pred_check_branch
      %60 = sbr.rel (0) target = $region21
    $region20: #{tpu_custom_call.1} parent=1 // pred_region
      %62 = vsyncadd [#allocation9], 0
      %s63 = sshll.u32 %s4, 4
      %s64 = int_to_ptr.hbm [resolvable:$true] %s63
      %s65 = sshll.u32 [#allocation8], 4
      %s66 = int_to_ptr.vmem [resolvable:$true] %s65
      %71 = dma.hbm_to_vmem [thread:$0]  %s64, 256, %s66, [#allocation9], 64, 64, 4
    $region21: #{tpu_custom_call.1} parent=1 // pred_fallthru
      _
    // Predicated region
    $region22: #{tpu_custom_call.1} parent=1 // pred_check
      _
    $region23: #{tpu_custom_call.1} parent=1 // pred_check_branch
      %73 = sbr.rel (0) target = $region25
    $region24: #{tpu_custom_call.1} parent=1 // pred_region
      _
    $region25: #{tpu_custom_call.1} parent=1 // pred_fallthru
      _
    // Predicated region
    $region26: #{tpu_custom_call.1} parent=1 // pred_check
      _
    $region27: #{tpu_custom_call.1} parent=1 // pred_check_branch
      %75 = sbr.rel (0) target = $region29
    $region28: #{tpu_custom_call.1} parent=1 // pred_region
      _
    $region29: #{tpu_custom_call.1} parent=1 // pred_fallthru
      _
    // Predicated region
    $region30: #{tpu_custom_call.1} parent=1 // pred_check
      _
    $region31: #{tpu_custom_call.1} parent=1 // pred_check_branch
      %77 = sbr.rel (0) target = $region33
    $region32: #{tpu_custom_call.1} parent=1 // pred_region
      _
    $region33: #{tpu_custom_call.1} parent=1 // pred_fallthru
      _
    // Predicated region
    $region34: #{tpu_custom_call.1} parent=1 // pred_check
      _
    $region35: #{tpu_custom_call.1} parent=1 // pred_check_branch
      %79 = sbr.rel (0) target = $region37
    $region36: #{tpu_custom_call.1} parent=1 // pred_region
      %81 = dma.done [#allocation3], 256
    $region37: #{tpu_custom_call.1} parent=1 // pred_fallthru
      _
    // Predicated region
    $region38: #{tpu_custom_call.1} parent=1 // pred_check
      _
    $region39: #{tpu_custom_call.1} parent=1 // pred_check_branch
      %83 = sbr.rel (0) target = $region41
    $region40: #{tpu_custom_call.1} parent=1 // pred_region
      %85 = dma.done [#allocation6], 32
    $region41: #{tpu_custom_call.1} parent=1 // pred_fallthru
      _
    // Predicated region
    $region42: #{tpu_custom_call.1} parent=1 // pred_check
      _
    $region43: #{tpu_custom_call.1} parent=1 // pred_check_branch
      %87 = sbr.rel (0) target = $region45
    $region44: #{tpu_custom_call.1} parent=1 // pred_region
      %89 = dma.done [#allocation6], 256
    $region45: #{tpu_custom_call.1} parent=1 // pred_fallthru
      _
    // Predicated region
    $region46: #{tpu_custom_call.1} parent=1 // pred_check
      _
    $region47: #{tpu_custom_call.1} parent=1 // pred_check_branch
      %91 = sbr.rel (0) target = $region49
    $region48: #{tpu_custom_call.1} parent=1 // pred_region
      %93 = dma.done [#allocation9], 256
    $region49: #{tpu_custom_call.1} parent=1 // pred_fallthru
      _
    %v95 = vld [vmem:[#allocation2] sm:$0xff]
    %v96 = vld [vmem:[#allocation2 + $0x8] sm:$0xff]
    %v97 = vpack.c.bf16 %v96, %v95
    %v98 = vld [vmem:[#allocation7] sm:$0xf]
    %v99 = vld [vmem:[#allocation7 + $0x4] sm:$0xf]
    %v100 = vld [vmem:[#allocation7 + $0x8] sm:$0xf]
    %v101 = vld [vmem:[#allocation7 + $0xc] sm:$0xf]
    %v102 = vld [vmem:[%s3] sm:$0x1]
    %v104 = vperm.slane %v102, 0
    %v110 = vunpack.c.l.b16 %v98
    %v111 = vunpack.c.l.b16 %v99
    %v112 = vunpack.c.l.b16 %v100
    %v113 = vunpack.c.l.b16 %v101
    %v114 = vpack.c.b16 %v111, %v110
    %v115 = vpack.c.b16 %v113, %v112
    %vm118 = vcmask 261120
    %v120 = vsel %vm118, %v97, 0
    %122 = vmatpush.bf16.msra.mxu0 0
    %123 = vmatpush.bf16.msra.mxu0 0
    %124 = vmatpush.bf16.msra.mxu0 0
    %125 = vmatpush.bf16.msra.mxu0 0
    %126 = vmatpush.bf16.msra.mxu0 0
    %127 = vmatpush.bf16.msra.mxu0 0
    %128 = vmatpush.bf16.msra.mxu0 %v115
    %129 = vmatpush.bf16.msra.mxu0 %v114
    %130 = vmatmul.bf16.gmra.mxu0 %v120
    %v131 = vpop.f32.mrf.mxu0
    %v132 = vadd.f32 %v104, %v131
    %v133 = vpop.f32.mrf.mxu0
    %v134 = vadd.f32 %v104, %v133
    %135 = vdwg.mxu0
    %v136 = vmul.f32 %v132, 0.25
    %v137 = vmul.f32 %v134, 0.25
    %140 = vrot.lane.b32.xlu0 %v136, 112
    %v141 = vpop.permute.xlu0 %140
    %142 = vrot.lane.b32.xlu0 %v137, 112
    %v143 = vpop.permute.xlu0 %142
    %148 = vrot.lane.b32.xlu0 %v132, 112
    %v149 = vpop.permute.xlu0 %148
    %150 = vrot.lane.b32.xlu0 %v134, 112
    %v151 = vpop.permute.xlu0 %150
    %v154 = vld [vmem:[#allocation5] sm:$0x3]
    %vm155 = vcmp.ne.s32.totalorder %v154, 0
    %v156 = vsel %vm155, -1e+30, 0.0
    %v158 = vrot.slane %v156, 6
    %vm160 = vcmask 1041408
    %v161 = vsel %vm160, %v156, %v158
    %v162 = vpack.c.bf16 %v136, %v136
    %v163 = vpack.c.bf16 %v137, %v137
    %v164 = vpack.c.bf16 %v141, %v141
    %v165 = vpack.c.bf16 %v143, %v143
    %v166 = vpack.c.bf16 %v132, %v132
    %v167 = vpack.c.bf16 %v134, %v134
    %v168 = vpack.c.bf16 %v149, %v149
    %v169 = vpack.c.bf16 %v151, %v151
    %v171 = vrot.slane %v161, 1
    %v172 = vrot.slane %v161, 2
    %v173 = vrot.slane %v161, 3
    %v174 = vperm.slane %v161, 0
    %v175 = vperm.slane %v171, 0
    %v176 = vperm.slane %v172, 0
    %v177 = vperm.slane %v173, 0
    %v183 = vunpack.c.l.b16 %v166
    %v184 = vpack.c.b16 %v183, %v183
    %185 = vrot.lane.b32.xlu0 %v184, 96
    %v186 = vpop.permute.xlu0 %185
    %vm187 = vcmask 130048
    %v189 = vsel %vm187, %v162, 0
    %v192 = vsel %vm187, %v186, 0
    %194 = vmatpush.bf16.xpose.msra.mxu0 0
    %195 = vmatpush.bf16.xpose.msra.mxu0 0
    %196 = vmatpush.bf16.xpose.msra.mxu0 0
    %197 = vmatpush.bf16.xpose.msra.mxu0 0
    %198 = vmatpush.bf16.xpose.msra.mxu0 0
    %199 = vmatpush.bf16.xpose.msra.mxu0 0
    %200 = vmatpush.bf16.xpose.msra.mxu0 0
    %201 = vmatpush.bf16.xpose.msra.mxu0 %v192
    %202 = vmatmul.bf16.gmra.mxu0 %v189
    %v203 = vpop.f32.mrf.mxu0
    %v204 = vadd.f32 %v174, %v203
    %v205 = vpop.f32.mrf.mxu0
    %206 = vdwg.mxu0
    %v208 = vunpack.c.l.b16 %v167
    %v209 = vpack.c.b16 %v208, %v208
    %210 = vrot.lane.b32.xlu0 %v209, 96
    %v211 = vpop.permute.xlu0 %210
    %v213 = vsel %vm187, %v163, 0
    %v216 = vsel %vm187, %v211, 0
    %218 = vmatpush.bf16.xpose.msra.mxu0 0
    %219 = vmatpush.bf16.xpose.msra.mxu0 0
    %220 = vmatpush.bf16.xpose.msra.mxu0 0
    %221 = vmatpush.bf16.xpose.msra.mxu0 0
    %222 = vmatpush.bf16.xpose.msra.mxu0 0
    %223 = vmatpush.bf16.xpose.msra.mxu0 0
    %224 = vmatpush.bf16.xpose.msra.mxu0 0
    %225 = vmatpush.bf16.xpose.msra.mxu0 %v216
    %226 = vmatmul.bf16.gmra.mxu0 %v213
    %v227 = vpop.f32.mrf.mxu0
    %v228 = vadd.f32 %v175, %v227
    %v229 = vpop.f32.mrf.mxu0
    %230 = vdwg.mxu0
    %v232 = vunpack.c.l.b16 %v168
    %v233 = vpack.c.b16 %v232, %v232
    %234 = vrot.lane.b32.xlu0 %v233, 96
    %v235 = vpop.permute.xlu0 %234
    %v237 = vsel %vm187, %v164, 0
    %v240 = vsel %vm187, %v235, 0
    %242 = vmatpush.bf16.xpose.msra.mxu0 0
    %243 = vmatpush.bf16.xpose.msra.mxu0 0
    %244 = vmatpush.bf16.xpose.msra.mxu0 0
    %245 = vmatpush.bf16.xpose.msra.mxu0 0
    %246 = vmatpush.bf16.xpose.msra.mxu0 0
    %247 = vmatpush.bf16.xpose.msra.mxu0 0
    %248 = vmatpush.bf16.xpose.msra.mxu0 0
    %249 = vmatpush.bf16.xpose.msra.mxu0 %v240
    %250 = vmatmul.bf16.gmra.mxu0 %v237
    %v251 = vpop.f32.mrf.mxu0
    %v252 = vadd.f32 %v176, %v251
    %v253 = vpop.f32.mrf.mxu0
    %254 = vdwg.mxu0
    %v256 = vunpack.c.l.b16 %v169
    %v257 = vpack.c.b16 %v256, %v256
    %258 = vrot.lane.b32.xlu0 %v257, 96
    %v259 = vpop.permute.xlu0 %258
    %v261 = vsel %vm187, %v165, 0
    %v264 = vsel %vm187, %v259, 0
    %266 = vmatpush.bf16.xpose.msra.mxu0 0
    %267 = vmatpush.bf16.xpose.msra.mxu0 0
    %268 = vmatpush.bf16.xpose.msra.mxu0 0
    %269 = vmatpush.bf16.xpose.msra.mxu0 0
    %270 = vmatpush.bf16.xpose.msra.mxu0 0
    %271 = vmatpush.bf16.xpose.msra.mxu0 0
    %272 = vmatpush.bf16.xpose.msra.mxu0 0
    %273 = vmatpush.bf16.xpose.msra.mxu0 %v264
    %274 = vmatmul.bf16.gmra.mxu0 %v261
    %v275 = vpop.f32.mrf.mxu0
    %v276 = vadd.f32 %v177, %v275
    %v277 = vpop.f32.mrf.mxu0
    %278 = vdwg.mxu0
    %vm279 = vcmask 64512
    %v280 = vsel %vm279, %v204, -inf
    %281 = vmax.xlane.f32.xlu0 %v280
    %v282 = vpop.xlane.xlu0 %281
    %v283 = vsel %vm279, %v228, -inf
    %284 = vmax.xlane.f32.xlu0 %v283
    %v285 = vpop.xlane.xlu0 %284
    %v286 = vsel %vm279, %v252, -inf
    %287 = vmax.xlane.f32.xlu0 %v286
    %v288 = vpop.xlane.xlu0 %287
    %v289 = vsel %vm279, %v276, -inf
    %290 = vmax.xlane.f32.xlu0 %v289
    %v291 = vpop.xlane.xlu0 %290
    %v292 = vsub.f32 %v204, %v282
    %v293 = vsub.f32 %v228, %v285
    %v294 = vsub.f32 %v252, %v288
    %v295 = vsub.f32 %v276, %v291
    %v296 = vmul.f32 %v292, 1.442695
    %v297 = vpow.pop %v296
    %v298 = vmul.f32 %v293, 1.442695
    %v299 = vpow.pop %v298
    %v300 = vmul.f32 %v294, 1.442695
    %v301 = vpow.pop %v300
    %v302 = vmul.f32 %v295, 1.442695
    %v303 = vpow.pop %v302
    %v304 = vsel %vm279, %v297, 0.0
    %305 = vadd.xlane.f32.xlu0 %v304
    %v306 = vpop.xlane.xlu0 %305
    %v307 = vsel %vm279, %v299, 0.0
    %308 = vadd.xlane.f32.xlu0 %v307
    %v309 = vpop.xlane.xlu0 %308
    %v310 = vsel %vm279, %v301, 0.0
    %311 = vadd.xlane.f32.xlu0 %v310
    %v312 = vpop.xlane.xlu0 %311
    %v313 = vsel %vm279, %v303, 0.0
    %314 = vadd.xlane.f32.xlu0 %v313
    %v315 = vpop.xlane.xlu0 %314
    %v316 = vrcp.pop %v306
    %v317 = vmul.f32 %v306, %v316
    %v318 = vsub.f32 1.0, %v317
    %v319 = vmul.f32 %v316, %v318
    %v320 = vadd.f32 %v316, %v319
    %vm321 = vweird.f32 %v306
    %vm322 = vweird.f32 %v316
    %vm323 = vmor %vm321, %vm322
    %v324 = vsel %vm323, %v316, %v320
    %v325 = vand.u32 2147483647, %v306
    %vm326 = vcmp.eq.f32.partialorder %v325, 8.507059e+37
    %v327 = vand.u32 %v306, 2147483648
    %v328 = vor.u32 1.1754944e-38, %v327
    %v329 = vsel %vm326, %v328, %v324
    %v330 = vmul.f32 %v297, %v329
    %v331 = vrcp.pop %v309
    %v332 = vmul.f32 %v309, %v331
    %v333 = vsub.f32 1.0, %v332
    %v334 = vmul.f32 %v331, %v333
    %v335 = vadd.f32 %v331, %v334
    %vm336 = vweird.f32 %v309
    %vm337 = vweird.f32 %v331
    %vm338 = vmor %vm336, %vm337
    %v339 = vsel %vm338, %v331, %v335
    %v340 = vand.u32 2147483647, %v309
    %vm341 = vcmp.eq.f32.partialorder %v340, 8.507059e+37
    %v342 = vand.u32 %v309, 2147483648
    %v343 = vor.u32 1.1754944e-38, %v342
    %v344 = vsel %vm341, %v343, %v339
    %v345 = vmul.f32 %v299, %v344
    %v346 = vrcp.pop %v312
    %v347 = vmul.f32 %v312, %v346
    %v348 = vsub.f32 1.0, %v347
    %v349 = vmul.f32 %v346, %v348
    %v350 = vadd.f32 %v346, %v349
    %vm351 = vweird.f32 %v312
    %vm352 = vweird.f32 %v346
    %vm353 = vmor %vm351, %vm352
    %v354 = vsel %vm353, %v346, %v350
    %v355 = vand.u32 2147483647, %v312
    %vm356 = vcmp.eq.f32.partialorder %v355, 8.507059e+37
    %v357 = vand.u32 %v312, 2147483648
    %v358 = vor.u32 1.1754944e-38, %v357
    %v359 = vsel %vm356, %v358, %v354
    %v360 = vmul.f32 %v301, %v359
    %v361 = vrcp.pop %v315
    %v362 = vmul.f32 %v315, %v361
    %v363 = vsub.f32 1.0, %v362
    %v364 = vmul.f32 %v361, %v363
    %v365 = vadd.f32 %v361, %v364
    %vm366 = vweird.f32 %v315
    %vm367 = vweird.f32 %v361
    %vm368 = vmor %vm366, %vm367
    %v369 = vsel %vm368, %v361, %v365
    %v370 = vand.u32 2147483647, %v315
    %vm371 = vcmp.eq.f32.partialorder %v370, 8.507059e+37
    %v372 = vand.u32 %v315, 2147483648
    %v373 = vor.u32 1.1754944e-38, %v372
    %v374 = vsel %vm371, %v373, %v369
    %v375 = vmul.f32 %v303, %v374
    %376 = vst.msk [vmem:[#allocation11] sm:$0xff] %vm279, %v330
    %377 = vst.msk [vmem:[#allocation11 + $0x8] sm:$0xff] %vm279, %v345
    %378 = vst.msk [vmem:[#allocation11 + $0x10] sm:$0xff] %vm279, %v360
    %379 = vst.msk [vmem:[#allocation11 + $0x18] sm:$0xff] %vm279, %v375
    %v380 = vpack.c.bf16 %v330, %v330
    %v381 = vpack.c.bf16 %v345, %v345
    %v382 = vpack.c.bf16 %v360, %v360
    %v383 = vpack.c.bf16 %v375, %v375
    %384 = vrot.lane.b32.xlu0 %v184, 64
    %v385 = vpop.permute.xlu0 %384
    %v387 = vsel %vm279, %v380, 0
    %vm389 = vcmask 1043456
    %v391 = vsel %vm389, %v385, 0
    %393 = vmatpush.bf16.msra.mxu0 0
    %394 = vmatpush.bf16.msra.mxu0 0
    %395 = vmatpush.bf16.msra.mxu0 0
    %396 = vmatpush.bf16.msra.mxu0 0
    %397 = vmatpush.bf16.msra.mxu0 0
    %398 = vmatpush.bf16.msra.mxu0 0
    %399 = vmatpush.bf16.msra.mxu0 0
    %400 = vmatpush.bf16.msra.mxu0 %v391
    %401 = vmatmul.bf16.gmra.mxu0 %v387
    %v402 = vpop.f32.mrf.mxu0
    %v403 = vadd.f32 0.0, %v402
    %v404 = vpop.f32.mrf.mxu0
    %405 = vdwg.mxu0
    %406 = vrot.lane.b32.xlu0 %v209, 64
    %v407 = vpop.permute.xlu0 %406
    %v409 = vsel %vm279, %v381, 0
    %v412 = vsel %vm389, %v407, 0
    %414 = vmatpush.bf16.msra.mxu0 0
    %415 = vmatpush.bf16.msra.mxu0 0
    %416 = vmatpush.bf16.msra.mxu0 0
    %417 = vmatpush.bf16.msra.mxu0 0
    %418 = vmatpush.bf16.msra.mxu0 0
    %419 = vmatpush.bf16.msra.mxu0 0
    %420 = vmatpush.bf16.msra.mxu0 0
    %421 = vmatpush.bf16.msra.mxu0 %v412
    %422 = vmatmul.bf16.gmra.mxu0 %v409
    %v423 = vpop.f32.mrf.mxu0
    %v424 = vadd.f32 0.0, %v423
    %v425 = vpop.f32.mrf.mxu0
    %426 = vdwg.mxu0
    %427 = vrot.lane.b32.xlu0 %v233, 64
    %v428 = vpop.permute.xlu0 %427
    %v430 = vsel %vm279, %v382, 0
    %v433 = vsel %vm389, %v428, 0
    %435 = vmatpush.bf16.msra.mxu0 0
    %436 = vmatpush.bf16.msra.mxu0 0
    %437 = vmatpush.bf16.msra.mxu0 0
    %438 = vmatpush.bf16.msra.mxu0 0
    %439 = vmatpush.bf16.msra.mxu0 0
    %440 = vmatpush.bf16.msra.mxu0 0
    %441 = vmatpush.bf16.msra.mxu0 0
    %442 = vmatpush.bf16.msra.mxu0 %v433
    %443 = vmatmul.bf16.gmra.mxu0 %v430
    %v444 = vpop.f32.mrf.mxu0
    %v445 = vadd.f32 0.0, %v444
    %v446 = vpop.f32.mrf.mxu0
    %447 = vdwg.mxu0
    %448 = vrot.lane.b32.xlu0 %v257, 64
    %v449 = vpop.permute.xlu0 %448
    %v451 = vsel %vm279, %v383, 0
    %v454 = vsel %vm389, %v449, 0
    %456 = vmatpush.bf16.msra.mxu0 0
    %457 = vmatpush.bf16.msra.mxu0 0
    %458 = vmatpush.bf16.msra.mxu0 0
    %459 = vmatpush.bf16.msra.mxu0 0
    %460 = vmatpush.bf16.msra.mxu0 0
    %461 = vmatpush.bf16.msra.mxu0 0
    %462 = vmatpush.bf16.msra.mxu0 0
    %463 = vmatpush.bf16.msra.mxu0 %v454
    %464 = vmatmul.bf16.gmra.mxu0 %v451
    %v465 = vpop.f32.mrf.mxu0
    %v466 = vadd.f32 0.0, %v465
    %v467 = vpop.f32.mrf.mxu0
    %468 = vdwg.mxu0
    %471 = vrot.lane.b32.xlu0 %v445, 16
    %v472 = vpop.permute.xlu0 %471
    %473 = vrot.lane.b32.xlu0 %v466, 16
    %v474 = vpop.permute.xlu0 %473
    %v477 = vsel %vm187, %v403, %v472
    %v478 = vsel %vm187, %v424, %v474
    %v479 = vpack.c.bf16 %v478, %v477
    %v480 = vld [vmem:[#allocation8] sm:$0xf]
    %v481 = vld [vmem:[#allocation8 + $0x4] sm:$0xf]
    %v482 = vld [vmem:[#allocation8 + $0x8] sm:$0xf]
    %v483 = vld [vmem:[#allocation8 + $0xc] sm:$0xf]
    %v484 = vld [vmem:[%s5] sm:$0x1]
    %v486 = vperm.slane %v484, 0
    %v492 = vunpack.c.l.b16 %v480
    %v493 = vunpack.c.l.b16 %v481
    %v494 = vunpack.c.l.b16 %v482
    %v495 = vunpack.c.l.b16 %v483
    %v496 = vpack.c.b16 %v493, %v492
    %v497 = vpack.c.b16 %v495, %v494
    %v501 = vsel %vm118, %v479, 0
    %503 = vmatpush.bf16.msra.mxu0 0
    %504 = vmatpush.bf16.msra.mxu0 0
    %505 = vmatpush.bf16.msra.mxu0 0
    %506 = vmatpush.bf16.msra.mxu0 0
    %507 = vmatpush.bf16.msra.mxu0 0
    %508 = vmatpush.bf16.msra.mxu0 0
    %509 = vmatpush.bf16.msra.mxu0 %v497
    %510 = vmatpush.bf16.msra.mxu0 %v496
    %511 = vmatmul.bf16.gmra.mxu0 %v501
    %v512 = vpop.f32.mrf.mxu0
    %v513 = vadd.f32 %v486, %v512
    %v514 = vpop.f32.mrf.mxu0
    %v515 = vadd.f32 %v486, %v514
    %516 = vdwg.mxu0
    %v517 = vadd.f32 %v513, %v95
    %v518 = vadd.f32 %v515, %v96
    %v519 = vsel %vm118, %v517, 0.0
    %520 = vadd.xlane.f32.xlu0 %v519
    %v521 = vpop.xlane.xlu0 %520
    %v522 = vsel %vm118, %v518, 0.0
    %523 = vadd.xlane.f32.xlu0 %v522
    %v524 = vpop.xlane.xlu0 %523
    %v525 = vrcp.pop 32.0
    %v526 = vmul.f32 32.0, %v525
    %v527 = vsub.f32 1.0, %v526
    %v528 = vmul.f32 %v525, %v527
    %v529 = vadd.f32 %v525, %v528
    %vm530 = vweird.f32 %v525
    %v531 = vsel %vm530, %v525, %v529
    %v532 = vmul.f32 %v521, %v531
    %v533 = vmul.f32 %v524, %v531
    %v534 = vsub.f32 %v517, %v532
    %v535 = vsub.f32 %v518, %v533
    %v536 = vmul.f32 %v534, %v534
    %v537 = vmul.f32 %v535, %v535
    %v538 = vsel %vm118, %v536, 0.0
    %539 = vadd.xlane.f32.xlu0 %v538
    %v540 = vpop.xlane.xlu0 %539
    %v541 = vsel %vm118, %v537, 0.0
    %542 = vadd.xlane.f32.xlu0 %v541
    %v543 = vpop.xlane.xlu0 %542
    %v544 = vmul.f32 %v540, %v531
    %v545 = vmul.f32 %v543, %v531
    %v546 = vadd.f32 %v544, 1e-05
    %v547 = vadd.f32 %v545, 1e-05
    %v548 = vrsqrt.pop %v546
    %v549 = vmul.f32 %v548, %v546
    %v550 = vmul.f32 %v549, %v548
    %v551 = vmul.f32 0.5, %v550
    %v552 = vsub.f32 1.5, %v551
    %v553 = vmul.f32 %v548, %v552
    %vm554 = vweird.f32 %v546
    %vm555 = vweird.f32 %v548
    %vm556 = vmor %vm554, %vm555
    %v557 = vsel %vm556, %v548, %v553
    %v558 = vrsqrt.pop %v547
    %v559 = vmul.f32 %v558, %v547
    %v560 = vmul.f32 %v559, %v558
    %v561 = vmul.f32 0.5, %v560
    %v562 = vsub.f32 1.5, %v561
    %v563 = vmul.f32 %v558, %v562
    %vm564 = vweird.f32 %v547
    %vm565 = vweird.f32 %v558
    %vm566 = vmor %vm564, %vm565
    %v567 = vsel %vm566, %v558, %v563
    %v568 = vmul.f32 %v534, %v557
    %v569 = vmul.f32 %v535, %v567
    %v570 = vld [vmem:[%s6] sm:$0x1]
    %v572 = vperm.slane %v570, 0
    %v574 = vmul.f32 %v568, %v572
    %v575 = vmul.f32 %v569, %v572
    %v576 = vld [vmem:[%s7] sm:$0x1]
    %v578 = vperm.slane %v576, 0
    %v580 = vadd.f32 %v574, %v578
    %v581 = vadd.f32 %v575, %v578
    %v584 = vrot.slane %v581, 7
    %vm585 = vcmask 1041409
    %v586 = vsel %vm585, %v584, %v580
    %v588 = vrot.slane %v580, 1
    %v589 = vsel %vm585, %v581, %v588
    %590 = vrot.lane.b32.xlu0 %v589, 32
    %v591 = vpop.permute.xlu0 %590
    %v593 = vrot.slane %v580, 2
    %v594 = vrot.slane %v581, 1
    %v595 = vsel %vm585, %v594, %v593
    %596 = vrot.lane.b32.xlu0 %v595, 64
    %v597 = vpop.permute.xlu0 %596
    %v599 = vrot.slane %v580, 3
    %v600 = vrot.slane %v581, 2
    %v601 = vsel %vm585, %v600, %v599
    %602 = vrot.lane.b32.xlu0 %v601, 96
    %v603 = vpop.permute.xlu0 %602
    %v605 = vrot.slane %v580, 4
    %v606 = vrot.slane %v581, 3
    %v607 = vsel %vm585, %v606, %v605
    %v609 = vrot.slane %v580, 5
    %v610 = vrot.slane %v581, 4
    %v611 = vsel %vm585, %v610, %v609
    %612 = vrot.lane.b32.xlu0 %v611, 32
    %v613 = vpop.permute.xlu0 %612
    %v615 = vrot.slane %v580, 6
    %v616 = vrot.slane %v581, 5
    %v617 = vsel %vm585, %v616, %v615
    %618 = vrot.lane.b32.xlu0 %v617, 64
    %v619 = vpop.permute.xlu0 %618
    %v621 = vrot.slane %v580, 7
    %v622 = vrot.slane %v581, 6
    %v623 = vsel %vm585, %v622, %v621
    %624 = vrot.lane.b32.xlu0 %v623, 96
    %v625 = vpop.permute.xlu0 %624
    %v627 = vsel %vm118, %v586, %v591
    %vm628 = vcmask 523264
    %v629 = vsel %vm628, %v627, %v597
    %vm630 = vcmask 785408
    %v631 = vsel %vm630, %v629, %v603
    %v632 = vsel %vm118, %v607, %v613
    %v633 = vsel %vm628, %v632, %v619
    %v634 = vsel %vm630, %v633, %v625
    %v637 = vrot.slane %v634, 6
    %v638 = vsel %vm160, %v631, %v637
    %640 = vst [vmem:[#allocation10] sm:$0xf] %v638
    // Predicated region
    $region50: #{tpu_custom_call.1} parent=1 // pred_check
      _
    $region51: #{tpu_custom_call.1} parent=1 // pred_check_branch
      %642 = sbr.rel (0) target = $region53
    $region52: #{tpu_custom_call.1} parent=1 // pred_region
      %644 = vsyncadd [#allocation4], 0
      %s646 = sshll.u32 [#allocation10], 4
      %s647 = int_to_ptr.vmem [resolvable:$true] %s646
      %s648 = sshll.u32 %s8, 4
      %s649 = int_to_ptr.hbm [resolvable:$true] %s648
      %651 = dma.vmem_to_hbm [thread:$0]  %s647, 64, %s649, [#allocation4]
    $region53: #{tpu_custom_call.1} parent=1 // pred_fallthru
      _
    // Predicated region
    $region54: #{tpu_custom_call.1} parent=1 // pred_check
      _
    $region55: #{tpu_custom_call.1} parent=1 // pred_check_branch
      %653 = sbr.rel (0) target = $region57
    $region56: #{tpu_custom_call.1} parent=1 // pred_region
      %655 = vsyncadd [#allocation12], 0
      %s656 = sshll.u32 [#allocation11], 4
      %s657 = int_to_ptr.vmem [resolvable:$true] %s656
      %s658 = sshll.u32 %s9, 4
      %s659 = int_to_ptr.hbm [resolvable:$true] %s658
      %664 = dma.vmem_to_hbm [thread:$0]  %s657, 512, %s659, [#allocation12], 128, 128, 8
    $region57: #{tpu_custom_call.1} parent=1 // pred_fallthru
      _
    // Predicated region
    $region58: #{tpu_custom_call.1} parent=1 // pred_check
      _
    $region59: #{tpu_custom_call.1} parent=1 // pred_check_branch
      %666 = sbr.rel (0) target = $region61
    $region60: #{tpu_custom_call.1} parent=1 // pred_region
      %668 = dma.done [#allocation4], 64
    $region61: #{tpu_custom_call.1} parent=1 // pred_fallthru
      _
    // Predicated region
    $region62: #{tpu_custom_call.1} parent=1 // pred_check
      _
    $region63: #{tpu_custom_call.1} parent=1 // pred_check_branch
      %670 = sbr.rel (0) target = $region65
    $region64: #{tpu_custom_call.1} parent=1 // pred_region
      %672 = dma.done [#allocation12], 512
    $region65: #{tpu_custom_call.1} parent=1 // pred_fallthru
      _
    %673 = vsyncpa [#allocation3], 1
    %674 = vsyncpa [#allocation6], 1
    %675 = vsyncpa [#allocation9], 1
    %676 = vsyncpa [#allocation4], 1
    %677 = vsyncpa [#allocation12], 1

</llo_original>
